<compile_context>
chip_gen: v7x
topology: tpu7x:2x2x1
jax: 0.10.0
libtpu: 0.0.40
codegen_flags: <defaults>
</compile_context>

<pallas_src>
import jax
import jax.numpy as jnp
from jax.experimental import pallas as pl
from jax.experimental.pallas import tpu as pltpu

EPS = 1e-12                    # matches torch F.normalize default eps
MATMUL_DTYPE = jnp.bfloat16    # MXU-friendly operand dtype (f32 accumulation)


def _compute_s_kernel(ref_ref, lr_ref, s_ref, h_ref):
    # ref_ref: (TM, C9p) pre-normalized bf16 ref patch rows -- current m tile
    # lr_ref : (C9p, TQ) pre-normalized bf16 lr  patch cols -- current q tile
    # s_ref  : (1, TQ) running max    (resident across the m axis)
    # h_ref  : (1, TQ) running argmax (resident across the m axis)
    m_idx = pl.program_id(2)

    @pl.when(m_idx == 0)
    def _init():
        s_ref[...] = jnp.full(s_ref.shape, -jnp.inf, dtype=s_ref.dtype)
        h_ref[...] = jnp.zeros(h_ref.shape, dtype=h_ref.dtype)

    # Cosine-similarity tile on the MXU (bf16 operands, f32 accumulation).
    m = jnp.dot(ref_ref[...], lr_ref[...],
                preferred_element_type=jnp.float32)            # (TM, TQ)

    tm = m.shape[0]
    tile_max = jnp.max(m, axis=0, keepdims=True)               # (1, TQ)
    # First-index argmax: cmp + select against a (TM,1) column iota, then a
    # min-reduce with sentinel `tm`.  ~2 VALU ops per element.
    row_iota = jax.lax.broadcasted_iota(jnp.int32, (tm, 1), 0)
    tile_arg = jnp.min(jnp.where(m == tile_max, row_iota, jnp.int32(tm)),
                       axis=0, keepdims=True) + m_idx * tm     # (1, TQ) global

    # Streaming update; strict `>` + ascending m tiles keeps first-index ties.
    better = tile_max > s_ref[...]
    h_ref[...] = jnp.where(better, tile_arg, h_ref[...])
    s_ref[...] = jnp.where(better, tile_max, s_ref[...])


def _unfold3x3_cols(x):
    """F.unfold(x, 3, padding=1): (B,C,H,W) -> (B, C*9, H*W)."""
    B, C, H, W = x.shape
    xp = jnp.pad(x, ((0, 0), (0, 0), (1, 1), (1, 1)))
    patches = [xp[:, :, kh:kh + H, kw:kw + W] for kh in range(3) for kw in range(3)]
    p = jnp.stack(patches, axis=2)             # (B, C, 9, H, W)
    return p.reshape(B, C * 9, H * W)


def _unfold3x3_rows(x):
    """Same patch vectors, built directly in (B, H*W, C*9) row layout."""
    B, C, H, W = x.shape
    xp = jnp.pad(x, ((0, 0), (0, 0), (1, 1), (1, 1)))
    patches = [xp[:, :, kh:kh + H, kw:kw + W] for kh in range(3) for kw in range(3)]
    p = jnp.stack(patches, axis=-1)            # (B, C, H, W, 9)
    p = p.transpose(0, 2, 3, 1, 4)             # (B, H, W, C, 9) — same (c,k) order
    return p.reshape(B, H * W, C * 9)


def _round_up(x, m):
    return ((x + m - 1) // m) * m


def _vmem_limit_bytes():
    """Generation-aware scoped-VMEM limit (v5e/v6e: 128 MiB, v7x: 64 MiB/TC)."""
    try:
        cap = pltpu.get_tpu_info().vmem_capacity_bytes
    except Exception:
        cap = 128 * 1024 * 1024
    return max(16 * 1024 * 1024, min(int(cap * 0.45), 96 * 1024 * 1024))


def _fit_tiles_to_vmem(tm, tq, c9_pad, budget_bytes):
    """Shrink (TM, TQ) until the estimated per-step VMEM footprint fits."""
    def estimate(tm_, tq_):
        inputs = 2 * tm_ * c9_pad * 2 + 2 * c9_pad * tq_ * 2   # dbl-buffered bf16
        temps = 3 * tm_ * tq_ * 4                               # f32 sim + i32 selects
        outs = 2 * 2 * tq_ * 4                                  # s/h output blocks
        return inputs + temps + outs
    while estimate(tm, tq) > budget_bytes:
        if tm > 256:
            tm = max(256, (tm // 2) // 256 * 256)
        elif tq > 128:
            tq = max(128, (tq // 2) // 128 * 128)
        else:
            break
    return tm, tq


def compute_s(lrsr_lv2, ref_lv2, *, tm_target=512, tq_target=1024):
    """Mirrors ComputeS.forward. Returns (S, H, command, Point)."""
    B, C, Hs, Ws = lrsr_lv2.shape
    HW = Hs * Ws
    C9 = C * 9
    C9_pad = _round_up(C9, 128)

    # im2col glue, built directly in the layouts the kernel consumes.
    lr_unf = _unfold3x3_cols(lrsr_lv2).astype(jnp.float32)    # (B, C9, HW)
    ref_unf = _unfold3x3_rows(ref_lv2).astype(jnp.float32)    # (B, HW, C9)

    # F.normalize: x / max(norm, eps) == x * rsqrt(max(sumsq, eps^2)); done
    # ONCE here in f32 and cast to bf16 (hoisted out of the grid loop).
    ref_n = ref_unf * jax.lax.rsqrt(
        jnp.maximum(jnp.sum(ref_unf * ref_unf, axis=2, keepdims=True), EPS * EPS))
    lr_n = lr_unf * jax.lax.rsqrt(
        jnp.maximum(jnp.sum(lr_unf * lr_unf, axis=1, keepdims=True), EPS * EPS))
    ref_n = ref_n.astype(MATMUL_DTYPE)
    lr_n = lr_n.astype(MATMUL_DTYPE)

    # Tile selection: lane-aligned TQ (x128), MXU-aligned TM (x256), sized to
    # the running chip's VMEM budget.
    vmem_limit = _vmem_limit_bytes()
    TQ = max(128, min(max(128, (tq_target // 128) * 128), _round_up(HW, 128)))
    TM = max(256, min(max(256, (tm_target // 256) * 256), _round_up(HW, 256)))
    TM, TQ = _fit_tiles_to_vmem(TM, TQ, C9_pad, int(vmem_limit * 0.8))
    # v7x shards "parallel" grid axes over 2 TensorCores; keep B*q_tiles >= 2.
    while B * ((HW + TQ - 1) // TQ) < 2 and TQ > 128:
        TQ = max(128, (TQ // 2) // 128 * 128)

    HW_q_pad = _round_up(HW, TQ)
    HW_m_pad = _round_up(HW, TM)

    # Padding: contraction dim with zeros (inert for normalized vectors), lr
    # columns with zeros (sliced off after the call), ref rows by edge
    # replication (a duplicate row ties but never strictly beats the original
    # earlier-indexed row, so max / first-index argmax are unchanged).
    ref_n = jnp.pad(ref_n, ((0, 0), (0, HW_m_pad - HW), (0, 0)), mode='edge')
    ref_n = jnp.pad(ref_n, ((0, 0), (0, 0), (0, C9_pad - C9)))
    lr_n = jnp.pad(lr_n, ((0, 0), (0, C9_pad - C9), (0, HW_q_pad - HW)))

    grid = (B, HW_q_pad // TQ, HW_m_pad // TM)

    s_flat, h_flat = pl.pallas_call(
        _compute_s_kernel,
        out_shape=(
            jax.ShapeDtypeStruct((B, 1, HW_q_pad), jnp.float32),
            jax.ShapeDtypeStruct((B, 1, HW_q_pad), jnp.int32),
        ),
        grid_spec=pltpu.PrefetchScalarGridSpec(
            num_scalar_prefetch=0,
            grid=grid,
            in_specs=[
                pl.BlockSpec((pl.Squeezed(), TM, C9_pad), lambda b, q, m: (b, m, 0)),
                pl.BlockSpec((pl.Squeezed(), C9_pad, TQ), lambda b, q, m: (b, 0, q)),
            ],
            out_specs=[
                pl.BlockSpec((pl.Squeezed(), 1, TQ), lambda b, q, m: (b, 0, q)),
                pl.BlockSpec((pl.Squeezed(), 1, TQ), lambda b, q, m: (b, 0, q)),
            ],
        ),
        compiler_params=pltpu.CompilerParams(
            dimension_semantics=("parallel", "parallel", "arbitrary"),
            vmem_limit_bytes=vmem_limit,
        ),
    )(ref_n, lr_n)

    S = s_flat[:, :, :HW].reshape(B, 1, Hs, Ws)
    Harg = h_flat[:, :, :HW].reshape(B, 1, Hs, Ws)
    # TODO(synk): torch returns int64 argmax; int32 here (fine for HW < 2^31).

    # level = [0, 10, 11]; `level[0] is 0` is always truthy in the reference
    # module, so the forward always takes the first branch (no data-dependent
    # host branching needed).
    command = '95'
    Point = None
    return S, Harg, command, Point


def _reference(lrsr_lv2, ref_lv2):
    """Pure-JAX reference of the hot path (same bf16 matmul math)."""
    lr_unf = _unfold3x3_cols(lrsr_lv2)
    ref_unf = _unfold3x3_rows(ref_lv2)
    ref_n = ref_unf * jax.lax.rsqrt(
        jnp.maximum(jnp.sum(ref_unf * ref_unf, axis=2, keepdims=True), EPS * EPS))
    lr_n = lr_unf * jax.lax.rsqrt(
        jnp.maximum(jnp.sum(lr_unf * lr_unf, axis=1, keepdims=True), EPS * EPS))
    R = jnp.einsum('bpc,bcq->bpq',
                   ref_n.astype(MATMUL_DTYPE), lr_n.astype(MATMUL_DTYPE),
                   preferred_element_type=jnp.float32)
    S = jnp.max(R, axis=1)
    Harg = jnp.argmax(R, axis=1).astype(jnp.int32)
    return R, S, Harg


if __name__ == "__main__":
    key = jax.random.PRNGKey(0)

    # Second case (12x12 -> HW=144) exercises the C9/HW padding + slicing path.
    for (B, C, H, W) in [(2, 4, 16, 16), (2, 4, 12, 12)]:
        key, k1, k2 = jax.random.split(key, 3)
        HW = H * W
        lrsr = jax.random.normal(k1, (B, C, H, W), dtype=jnp.float32)
        ref = jax.random.normal(k2, (B, C, H, W), dtype=jnp.float32)

        S, Harg, command, Point = compute_s(lrsr, ref)
        jax.block_until_ready((S, Harg))

        # Sanity checks against a pure-JAX reference of the hot path.
        R_ref, S_ref_flat, H_ref_flat = _reference(lrsr, ref)
        S_ref = S_ref_flat.reshape(B, 1, H, W)

        assert S.shape == (B, 1, H, W) and Harg.shape == (B, 1, H, W)
        assert command == '95' and Point is None
        assert jnp.allclose(S, S_ref, atol=1e-2, rtol=1e-2)

        # Argmax check robust to tie / near-tie reordering: the reference
        # similarity at the kernel-returned index must equal the reference max
        # (within bf16-level tolerance), and indices must be in-range (i.e.
        # padded ref rows never win).
        Hk = Harg.reshape(B, 1, HW).astype(jnp.int32)
        assert bool(jnp.all((Hk >= 0) & (Hk < HW)))
        gathered = jnp.take_along_axis(R_ref, Hk, axis=1)[:, 0, :]   # (B, HW)
        assert jnp.allclose(gathered, S_ref_flat, atol=1e-2, rtol=1e-2)

    print("KERNEL_OK")
</pallas_src>

<mosaic_0001>
module attributes {stable_mosaic.version = 11 : i64} {
  func.func @_compute_s_kernel(%arg0: i32, %arg1: i32, %arg2: i32, %arg3: memref<1x256x128xbf16, #tpu.memory_space<vmem>>, %arg4: memref<1x128x256xbf16, #tpu.memory_space<vmem>>, %arg5: memref<1x1x256xf32, #tpu.memory_space<vmem>>, %arg6: memref<1x1x256xi32, #tpu.memory_space<vmem>>) attributes {dimension_semantics = [#tpu.dimension_semantics<parallel>, #tpu.dimension_semantics<parallel>, #tpu.dimension_semantics<arbitrary>], iteration_bounds = array<i64: 2, 1, 1>, scalar_prefetch = 0 : i64, scratch_operands = 0 : i64, tpu.core_type = #tpu.core_type<tc>, window_params = [{transform_indices = @transform_0, window_bounds = array<i64: 1, 256, 128>}, {transform_indices = @transform_1, window_bounds = array<i64: 1, 128, 256>}, {transform_indices = @transform_2, window_bounds = array<i64: 1, 1, 256>}, {transform_indices = @transform_3, window_bounds = array<i64: 1, 1, 256>}]} {
    %c0_i32 = arith.constant 0 : i32
    %0 = arith.cmpi eq, %arg2, %c0_i32 : i32
    %1 = arith.extui %0 : i1 to i32
    %c0_i32_0 = arith.constant 0 : i32
    %2 = arith.cmpi ne, %1, %c0_i32_0 : i32
    scf.if %2 {
      %cst_24 = arith.constant 0xFF800000 : f32
      %37 = vector.broadcast %cst_24 : f32 to vector<1x256xf32>
      %c0_25 = arith.constant 0 : index
      %c0_26 = arith.constant 0 : index
      %c0_27 = arith.constant 0 : index
      %38 = vector.load %arg5[%c0_25, %c0_26, %c0_27] : memref<1x1x256xf32, #tpu.memory_space<vmem>>, vector<1x1x256xf32>
      %39 = vector.shape_cast %38 : vector<1x1x256xf32> to vector<1x256xf32>
      %40 = vector.shape_cast %37 : vector<1x256xf32> to vector<1x1x256xf32>
      tpu.vector_store %arg5[%c0_25, %c0_26, %c0_27], %40 {strides = array<i32>} : memref<1x1x256xf32, #tpu.memory_space<vmem>>, vector<1x1x256xf32>,
      %c0_i32_28 = arith.constant 0 : i32
      %41 = vector.broadcast %c0_i32_28 : i32 to vector<1x256xi32>
      %c0_29 = arith.constant 0 : index
      %c0_30 = arith.constant 0 : index
      %c0_31 = arith.constant 0 : index
      %42 = vector.load %arg6[%c0_29, %c0_30, %c0_31] : memref<1x1x256xi32, #tpu.memory_space<vmem>>, vector<1x1x256xi32>
      %43 = vector.shape_cast %42 : vector<1x1x256xi32> to vector<1x256xi32>
      %44 = vector.shape_cast %41 : vector<1x256xi32> to vector<1x1x256xi32>
      tpu.vector_store %arg6[%c0_29, %c0_30, %c0_31], %44 {strides = array<i32>} : memref<1x1x256xi32, #tpu.memory_space<vmem>>, vector<1x1x256xi32>,
    } else {
    }
    %c0 = arith.constant 0 : index
    %c0_1 = arith.constant 0 : index
    %c0_2 = arith.constant 0 : index
    %3 = vector.load %arg3[%c0, %c0_1, %c0_2] : memref<1x256x128xbf16, #tpu.memory_space<vmem>>, vector<1x256x128xbf16>
    %4 = vector.shape_cast %3 : vector<1x256x128xbf16> to vector<256x128xbf16>
    %c0_3 = arith.constant 0 : index
    %c0_4 = arith.constant 0 : index
    %c0_5 = arith.constant 0 : index
    %5 = vector.load %arg4[%c0_3, %c0_4, %c0_5] : memref<1x128x256xbf16, #tpu.memory_space<vmem>>, vector<1x128x256xbf16>
    %6 = vector.shape_cast %5 : vector<1x128x256xbf16> to vector<128x256xbf16>
    %cst = arith.constant dense<0.000000e+00> : vector<256x256xf32>
    %7 = tpu.matmul %4, %6, %cst {dimension_numbers = #tpu.dot_dimension_numbers<[1], [0], [0], [1], [0, 0, 1, 1], [], []>} : vector<256x128xbf16>, vector<128x256xbf16>, vector<256x256xf32> -> vector<256x256xf32>
    %cst_6 = arith.constant dense<0xFF800000> : vector<256xf32>
    %8 = vector.multi_reduction <maximumf>, %7, %cst_6 [0] : vector<256x256xf32> to vector<256xf32>
    %9 = vector.shape_cast %8 : vector<256xf32> to vector<1x256xf32>
    %10 = tpu.iota {dimensions = array<i32: 0>} : vector<256x1xi32>
    %11 = vector.broadcast %9 : vector<1x256xf32> to vector<256x256xf32>
    %12 = arith.cmpf oeq, %7, %11 : vector<256x256xf32>
    %c256_i32 = arith.constant 256 : i32
    %13 = vector.shape_cast %10 : vector<256x1xi32> to vector<256x1xi32>
    %14 = vector.broadcast %13 : vector<256x1xi32> to vector<256x256xi32>
    %15 = vector.broadcast %c256_i32 : i32 to vector<256x256xi32>
    %16 = arith.select %12, %14, %15 : vector<256x256xi1>, vector<256x256xi32>
    %cst_7 = arith.constant dense<2147483647> : vector<256xi32>
    %17 = vector.multi_reduction <minsi>, %16, %cst_7 [0] : vector<256x256xi32> to vector<256xi32>
    %18 = vector.shape_cast %17 : vector<256xi32> to vector<1x256xi32>
    %c256_i32_8 = arith.constant 256 : i32
    %19 = arith.muli %arg2, %c256_i32_8 : i32
    %20 = vector.broadcast %19 : i32 to vector<1x256xi32>
    %21 = arith.addi %18, %20 : vector<1x256xi32>
    %c0_9 = arith.constant 0 : index
    %c0_10 = arith.constant 0 : index
    %c0_11 = arith.constant 0 : index
    %22 = vector.load %arg5[%c0_9, %c0_10, %c0_11] : memref<1x1x256xf32, #tpu.memory_space<vmem>>, vector<1x1x256xf32>
    %23 = vector.shape_cast %22 : vector<1x1x256xf32> to vector<1x256xf32>
    %24 = arith.cmpf ogt, %9, %23 : vector<1x256xf32>
    %c0_12 = arith.constant 0 : index
    %c0_13 = arith.constant 0 : index
    %c0_14 = arith.constant 0 : index
    %25 = vector.load %arg6[%c0_12, %c0_13, %c0_14] : memref<1x1x256xi32, #tpu.memory_space<vmem>>, vector<1x1x256xi32>
    %26 = vector.shape_cast %25 : vector<1x1x256xi32> to vector<1x256xi32>
    %27 = arith.select %24, %21, %26 : vector<1x256xi1>, vector<1x256xi32>
    %c0_15 = arith.constant 0 : index
    %c0_16 = arith.constant 0 : index
    %c0_17 = arith.constant 0 : index
    %28 = vector.load %arg6[%c0_15, %c0_16, %c0_17] : memref<1x1x256xi32, #tpu.memory_space<vmem>>, vector<1x1x256xi32>
    %29 = vector.shape_cast %28 : vector<1x1x256xi32> to vector<1x256xi32>
    %30 = vector.shape_cast %27 : vector<1x256xi32> to vector<1x1x256xi32>
    tpu.vector_store %arg6[%c0_15, %c0_16, %c0_17], %30 {strides = array<i32>} : memref<1x1x256xi32, #tpu.memory_space<vmem>>, vector<1x1x256xi32>,
    %c0_18 = arith.constant 0 : index
    %c0_19 = arith.constant 0 : index
    %c0_20 = arith.constant 0 : index
    %31 = vector.load %arg5[%c0_18, %c0_19, %c0_20] : memref<1x1x256xf32, #tpu.memory_space<vmem>>, vector<1x1x256xf32>
    %32 = vector.shape_cast %31 : vector<1x1x256xf32> to vector<1x256xf32>
    %33 = arith.select %24, %9, %32 : vector<1x256xi1>, vector<1x256xf32>
    %c0_21 = arith.constant 0 : index
    %c0_22 = arith.constant 0 : index
    %c0_23 = arith.constant 0 : index
    %34 = vector.load %arg5[%c0_21, %c0_22, %c0_23] : memref<1x1x256xf32, #tpu.memory_space<vmem>>, vector<1x1x256xf32>
    %35 = vector.shape_cast %34 : vector<1x1x256xf32> to vector<1x256xf32>
    %36 = vector.shape_cast %33 : vector<1x256xf32> to vector<1x1x256xf32>
    tpu.vector_store %arg5[%c0_21, %c0_22, %c0_23], %36 {strides = array<i32>} : memref<1x1x256xf32, #tpu.memory_space<vmem>>, vector<1x1x256xf32>,
    return
  }
  func.func @transform_0(%arg0: i32, %arg1: i32, %arg2: i32) -> (i32, i32, i32) {
    %c0_i32 = arith.constant 0 : i32
    %c0_i32_0 = arith.constant 0 : i32
    return %arg0, %arg2, %c0_i32 : i32, i32, i32
  }
  func.func @transform_1(%arg0: i32, %arg1: i32, %arg2: i32) -> (i32, i32, i32) {
    %c0_i32 = arith.constant 0 : i32
    %c0_i32_0 = arith.constant 0 : i32
    return %arg0, %c0_i32, %arg1 : i32, i32, i32
  }
  func.func @transform_2(%arg0: i32, %arg1: i32, %arg2: i32) -> (i32, i32, i32) {
    %c0_i32 = arith.constant 0 : i32
    %c0_i32_0 = arith.constant 0 : i32
    return %arg0, %c0_i32, %arg1 : i32, i32, i32
  }
  func.func @transform_3(%arg0: i32, %arg1: i32, %arg2: i32) -> (i32, i32, i32) {
    %c0_i32 = arith.constant 0 : i32
    %c0_i32_0 = arith.constant 0 : i32
    return %arg0, %c0_i32, %arg1 : i32, i32, i32
  }
}

</mosaic_0001>

<llo_original>
// kernel: tpu_custom_call.1
$region0: #{tpu_custom_call.1}
  #allocation0 [shape = 'u32[]', space=smem, size = 0x4, offset = 0x4, fixed_abs, tag = 'smem constant byte address 0x4 - core index']
  #allocation1 [shape = 'u32[144,128]{1,0:T(1,128)}', space=vmem, size = 0x12000, scoped, tag = 'internal scratch']
  %s0 = inlined_call_operand.hbm [shape: bf16[2,256,128], index: 0, kind: input, shape index: {}]
  %s1 = inlined_call_operand.hbm [shape: bf16[2,128,256], index: 1, kind: input, shape index: {}]
  %s2 = inlined_call_operand.hbm [shape: f32[2,1,256], index: 2, kind: output, shape index: {0}]
  %s3 = inlined_call_operand.hbm [shape: s32[2,1,256], index: 3, kind: output, shape index: {1}]
  %4 = xla_tuple %s2, %s3
  %s5 = sld [smem:[#allocation0]]
  $region61: #{tpu_custom_call.1} parent=0
    _
  %s7 = ssub.s32 1, %s5
  %s8 = scalar_select 0, %s7, %s5
  $region1: #{tpu_custom_call.1} parent=0
    #allocation2 [shape = 'u8[131072]{0}', space=vmem, size = 0x20000, scoped, tag = 'input window, operand 0']
    #allocation3 [shape = 's32[2]{0}', space=sflag, size = 0x8, scoped, tag = 'scoped memory for tpu_custom_call.1']
    #allocation4 [shape = 's32[2]{0}', space=sflag, size = 0x8, scoped, tag = 'scoped memory for tpu_custom_call.1']
    #allocation5 [shape = 'u8[131072]{0}', space=vmem, size = 0x20000, scoped, tag = 'input window, operand 1']
    #allocation6 [shape = 's32[2]{0}', space=sflag, size = 0x8, scoped, tag = 'scoped memory for tpu_custom_call.1']
    #allocation7 [shape = 'u8[2048]{0}', space=vmem, size = 0x800, scoped, tag = 'output window, operand 0']
    #allocation8 [shape = 'u8[2048]{0}', space=vmem, size = 0x800, scoped, tag = 'output window, operand 1']
    #allocation9 [shape = 's32[2]{0}', space=sflag, size = 0x8, scoped, tag = 'scoped memory for tpu_custom_call.1']
    %9 = vsyncpa [#allocation3], 0
    %s10 = scalar_lea.sflag [#allocation3], 1
    %11 = vsyncpa %s10, 0
    %12 = vsyncpa [#allocation6], 0
    %s13 = scalar_lea.sflag [#allocation6], 1
    %14 = vsyncpa %s13, 0
    %15 = vsyncpa [#allocation4], 0
    %s16 = scalar_lea.sflag [#allocation4], 1
    %17 = vsyncpa %s16, 0
    %18 = vsyncpa [#allocation9], 0
    %s19 = scalar_lea.sflag [#allocation9], 1
    %20 = vsyncpa %s19, 0
    loop: start=0, step=1, limit=4
    $region2: #{tpu_custom_call.1} parent=1 // loop_pre_header
      _
    $region3: #{tpu_custom_call.1} parent=1 // loop_header
      %s22 = sphi 0, %s26
      %p23 = scmp.ge.s32.totalorder %s22, 4
      %s29 = sphi 0, %s48
      %s30 = sphi 0, %s44
      %s31 = sphi 0, %s40
      %s32 = sphi 0, %s29
      %s33 = sphi 0, %s30
      %s34 = sphi 0, %s31
      %s35 = sphi 0, %s32
      %s36 = sphi 0, %s33
      %s37 = sphi 0, %s34
      %s53 = sphi 0, %s55
      %s56 = sphi 0, %s53
      %s57 = sphi 0, %s56
      %s73 = sphi 0, %s57
      %s81 = sphi 0, %s83
      %s84 = sphi 0, %s81
      %s85 = sphi 0, %s84
      %s101 = sphi 0, %s85
      %s109 = sphi 0, %s111
      %s112 = sphi 0, %s109
      %s113 = sphi 0, %s112
      %s129 = sphi 0, %s113
      %s137 = sphi 0, %s139
      %s140 = sphi 0, %s137
      %s141 = sphi 0, %s140
      %s157 = sphi 0, %s141
    $region4: #{tpu_custom_call.1} parent=1 // loop_header_branch
      %25 = sbr.rel (%p23) target = $region8
    $region5: #{tpu_custom_call.1} parent=1 // loop_body
      %s27 = ssub.s32 %s22, 1
      %s28 = ssub.s32 %s22, 2
      %s38 = sadd.s32 1, %s31
      %p39 = scmp.ge.s32.totalorder %s38, 1
      %s40 = scalar_select %p39, 0, %s38
      %s41 = sadd.s32 1, %s30
      %s42 = scalar_select %p39, %s41, %s30
      %p43 = scmp.ge.s32.totalorder %s42, 1
      %s44 = scalar_select %p43, 0, %s42
      %s45 = sadd.s32 1, %s29
      %s46 = scalar_select %p43, %s45, %s29
      %p47 = scmp.ge.s32.totalorder %s46, 2
      %s48 = scalar_select %p47, 0, %s46
      %s49 = ssub.s32 %s29, %s48
      %s50 = ssub.s32 %s31, %s40
      %s51 = sor.u32 %s49, %s50
      %p52 = scmp.eq.s32.totalorder %s51, 0
      %s54 = sadd.s32 %s53, 1
      %s55 = scalar_select %p52, %s53, %s54
      %p58 = pneg %p52
      %p59 = scmp.eq.s32.totalorder %s22, 1
      %p60 = por %p58, %p59
      %p61 = scmp.ne.s32.totalorder %s53, %s56
      %p62 = scmp.eq.s32.totalorder %s22, 0
      %p63 = por %p61, %p62
      %p64 = scmp.ne.s32.totalorder %s53, %s56
      %p65 = scmp.eq.s32.totalorder %s27, 1
      %p66 = por %p64, %p65
      %p67 = scmp.ne.s32.totalorder %s56, %s57
      %p68 = scmp.eq.s32.totalorder %s27, 0
      %p69 = por %p67, %p68
      %p70 = scmp.ne.s32.totalorder %s56, %s57
      %p71 = scmp.eq.s32.totalorder %s28, 1
      %p72 = por %p70, %p71
      %p74 = scmp.ne.s32.totalorder %s57, %s73
      %p75 = scmp.eq.s32.totalorder %s28, 0
      %p76 = por %p74, %p75
      %s77 = ssub.s32 %s29, %s48
      %s78 = ssub.s32 %s30, %s44
      %s79 = sor.u32 %s77, %s78
      %p80 = scmp.eq.s32.totalorder %s79, 0
      %s82 = sadd.s32 %s81, 1
      %s83 = scalar_select %p80, %s81, %s82
      %p86 = pneg %p80
      %p87 = scmp.eq.s32.totalorder %s22, 1
      %p88 = por %p86, %p87
      %p89 = scmp.ne.s32.totalorder %s81, %s84
      %p90 = scmp.eq.s32.totalorder %s22, 0
      %p91 = por %p89, %p90
      %p92 = scmp.ne.s32.totalorder %s81, %s84
      %p93 = scmp.eq.s32.totalorder %s27, 1
      %p94 = por %p92, %p93
      %p95 = scmp.ne.s32.totalorder %s84, %s85
      %p96 = scmp.eq.s32.totalorder %s27, 0
      %p97 = por %p95, %p96
      %p98 = scmp.ne.s32.totalorder %s84, %s85
      %p99 = scmp.eq.s32.totalorder %s28, 1
      %p100 = por %p98, %p99
      %p102 = scmp.ne.s32.totalorder %s85, %s101
      %p103 = scmp.eq.s32.totalorder %s28, 0
      %p104 = por %p102, %p103
      %s105 = ssub.s32 %s29, %s48
      %s106 = ssub.s32 %s30, %s44
      %s107 = sor.u32 %s105, %s106
      %p108 = scmp.eq.s32.totalorder %s107, 0
      %s110 = sadd.s32 %s109, 1
      %s111 = scalar_select %p108, %s109, %s110
      %p114 = pneg %p108
      %p115 = scmp.eq.s32.totalorder %s22, 1
      %p116 = por %p114, %p115
      %p117 = scmp.ne.s32.totalorder %s109, %s112
      %p118 = scmp.eq.s32.totalorder %s22, 0
      %p119 = por %p117, %p118
      %p120 = scmp.ne.s32.totalorder %s109, %s112
      %p121 = scmp.eq.s32.totalorder %s27, 1
      %p122 = por %p120, %p121
      %p123 = scmp.ne.s32.totalorder %s112, %s113
      %p124 = scmp.eq.s32.totalorder %s27, 0
      %p125 = por %p123, %p124
      %p126 = scmp.ne.s32.totalorder %s112, %s113
      %p127 = scmp.eq.s32.totalorder %s28, 1
      %p128 = por %p126, %p127
      %p130 = scmp.ne.s32.totalorder %s113, %s129
      %p131 = scmp.eq.s32.totalorder %s28, 0
      %p132 = por %p130, %p131
      %s133 = ssub.s32 %s29, %s48
      %s134 = ssub.s32 %s30, %s44
      %s135 = sor.u32 %s133, %s134
      %p136 = scmp.eq.s32.totalorder %s135, 0
      %s138 = sadd.s32 %s137, 1
      %s139 = scalar_select %p136, %s137, %s138
      %p142 = pneg %p136
      %p143 = scmp.eq.s32.totalorder %s22, 1
      %p144 = por %p142, %p143
      %p145 = scmp.ne.s32.totalorder %s137, %s140
      %p146 = scmp.eq.s32.totalorder %s22, 0
      %p147 = por %p145, %p146
      %p148 = scmp.ne.s32.totalorder %s137, %s140
      %p149 = scmp.eq.s32.totalorder %s27, 1
      %p150 = por %p148, %p149
      %p151 = scmp.ne.s32.totalorder %s140, %s141
      %p152 = scmp.eq.s32.totalorder %s27, 0
      %p153 = por %p151, %p152
      %p154 = scmp.ne.s32.totalorder %s140, %s141
      %p155 = scmp.eq.s32.totalorder %s28, 1
      %p156 = por %p154, %p155
      %p158 = scmp.ne.s32.totalorder %s141, %s157
      %p159 = scmp.eq.s32.totalorder %s28, 0
      %p160 = por %p158, %p159
      %p161 = scmp.le.s32.totalorder 1, %s22
      %p162 = scmp.lt.s32.totalorder %s22, 3
      %p163 = pnand %p161, %p162
      %p164 = pneg %p163
      // Predicated region
      $region9: #{tpu_custom_call.1} parent=5 // pred_check
        _
      $region10: #{tpu_custom_call.1} parent=5 // pred_check_branch
        %166 = sbr.rel (%p163) target = $region12
      $region11: #{tpu_custom_call.1} parent=5 // pred_region
        %s167 = ssub.s32 %s22, 1
      $region12: #{tpu_custom_call.1} parent=5 // pred_fallthru
        _
      %p168 = scmp.lt.s32.totalorder %s22, 2
      // Predicated region
      $region13: #{tpu_custom_call.1} parent=5 // pred_check
        %p169 = pneg %p168
      $region14: #{tpu_custom_call.1} parent=5 // pred_check_branch
        %171 = sbr.rel (%p169) target = $region16
      $region15: #{tpu_custom_call.1} parent=5 // pred_region
        // Predicated region
        $region17: #{tpu_custom_call.1} parent=15 // pred_check
          %p172 = pneg %p63
        $region18: #{tpu_custom_call.1} parent=15 // pred_check_branch
          %174 = sbr.rel (%p172) target = $region20
        $region19: #{tpu_custom_call.1} parent=15 // pred_region
          %s175 = sand.u32 %s53, 1
          %s176 = scalar_lea.sflag [#allocation3], %s175
          %s177 = sand.u32 %s53, 1
          %s178 = smul.addr %s177, 128
          %s179 = scalar_lea.vmem [#allocation2], %s178
          %s180 = smul.u32 32, %s31
          %s182 = ssub.s32 2048, 2048
          %183 = vsyncadd %s176, %s182
          %s184 = smul.addr %s29, 32
          %s185 = sadd.s32 %s180, %s184
          %s186 = smul.addr %s185, 64
          %s187 = scalar_lea.hbm %s0, %s186
          %s188 = sshll.u32 %s179, 4
          %s189 = int_to_ptr.vmem [resolvable:$true] %s188
          %194 = dma.hbm_to_vmem [thread:$0]  %s187, 2048, %s189, %s176, 64, 64, 4
        $region20: #{tpu_custom_call.1} parent=15 // pred_fallthru
          _
        // Predicated region
        $region21: #{tpu_custom_call.1} parent=15 // pred_check
          %p195 = pneg %p91
        $region22: #{tpu_custom_call.1} parent=15 // pred_check_branch
          %197 = sbr.rel (%p195) target = $region24
        $region23: #{tpu_custom_call.1} parent=15 // pred_region
          %s198 = sand.u32 %s81, 1
          %s199 = scalar_lea.sflag [#allocation6], %s198
          %s200 = sand.u32 %s81, 1
          %s201 = smul.addr %s200, 128
          %s202 = scalar_lea.vmem [#allocation5], %s201
          %s203 = smul.u32 2, %s30
          %s205 = ssub.s32 2048, 2048
          %206 = vsyncadd %s199, %s205
          %s207 = smul.addr %s29, 32
          %s208 = sadd.s32 %s203, %s207
          %s209 = smul.addr %s208, 64
          %s210 = scalar_lea.hbm %s1, %s209
          %s211 = sshll.u32 %s202, 4
          %s212 = int_to_ptr.vmem [resolvable:$true] %s211
          %217 = dma.hbm_to_vmem [thread:$0]  %s210, 2048, %s212, %s199, 128, 128, 8
        $region24: #{tpu_custom_call.1} parent=15 // pred_fallthru
          _
      $region16: #{tpu_custom_call.1} parent=5 // pred_fallthru
        _
      %p218 = scmp.le.s32.totalorder 1, %s22
      %p219 = scmp.lt.s32.totalorder %s22, 3
      %p220 = pnand %p218, %p219
      %p221 = pneg %p220
      // Predicated region
      $region25: #{tpu_custom_call.1} parent=5 // pred_check
        _
      $region26: #{tpu_custom_call.1} parent=5 // pred_check_branch
        %223 = sbr.rel (%p220) target = $region28
      $region27: #{tpu_custom_call.1} parent=5 // pred_region
        %s224 = ssub.s32 %s22, 1
        %s225 = sand.u32 %s56, 1
        %s226 = scalar_lea.sflag [#allocation3], %s225
        %s227 = sand.u32 %s56, 1
        %s228 = smul.addr %s227, 128
        %s229 = scalar_lea.vmem [#allocation2], %s228
        // Predicated region
        $region29: #{tpu_custom_call.1} parent=27 // pred_check
          %p230 = pneg %p69
        $region30: #{tpu_custom_call.1} parent=27 // pred_check_branch
          %232 = sbr.rel (%p230) target = $region32
        $region31: #{tpu_custom_call.1} parent=27 // pred_region
          %233 = dma.done %s226, 2048
        $region32: #{tpu_custom_call.1} parent=27 // pred_fallthru
          _
        %s234 = sand.u32 %s84, 1
        %s235 = scalar_lea.sflag [#allocation6], %s234
        %s236 = sand.u32 %s84, 1
        %s237 = smul.addr %s236, 128
        %s238 = scalar_lea.vmem [#allocation5], %s237
        // Predicated region
        $region33: #{tpu_custom_call.1} parent=27 // pred_check
          %p239 = pneg %p97
        $region34: #{tpu_custom_call.1} parent=27 // pred_check_branch
          %241 = sbr.rel (%p239) target = $region36
        $region35: #{tpu_custom_call.1} parent=27 // pred_region
          %242 = dma.done %s235, 2048
        $region36: #{tpu_custom_call.1} parent=27 // pred_fallthru
          _
        %s243 = sand.u32 %s56, 1
        %s244 = scalar_lea.sflag [#allocation3], %s243
        %s245 = sand.u32 %s56, 1
        %s246 = smul.addr %s245, 128
        %s247 = scalar_lea.vmem [#allocation2], %s246
        %p248 = pneg %p69
        %p249 = pneg %p66
        %s250 = sand.u32 %s84, 1
        %s251 = scalar_lea.sflag [#allocation6], %s250
        %s252 = sand.u32 %s84, 1
        %s253 = smul.addr %s252, 128
        %s254 = scalar_lea.vmem [#allocation5], %s253
        %p255 = pneg %p97
        %p256 = pneg %p94
        %p257 = pneg %p125
        %p258 = pneg %p122
        %s259 = sand.u32 %s112, 1
        %s260 = scalar_lea.sflag [#allocation4], %s259
        %s261 = sand.u32 %s112, 1
        %s262 = smul.addr %s261, 2
        %s263 = scalar_lea.vmem [#allocation7], %s262
        %p264 = pneg %p153
        %p265 = pneg %p150
        %s266 = sand.u32 %s140, 1
        %s267 = scalar_lea.sflag [#allocation9], %s266
        %s268 = sand.u32 %s140, 1
        %s269 = smul.addr %s268, 2
        %s270 = scalar_lea.vmem [#allocation8], %s269
        %s271 = smul.u32 32, %s34
        %s272 = smul.u32 2, %s33
        %s273 = smul.u32 2, %s33
        %s274 = smul.u32 2, %s33
        %p276 = scmp.eq.s32.totalorder %s34, 0
        // Predicated region
        $region37: #{tpu_custom_call.1} parent=27 // pred_check
          %p277 = pneg %p276
        $region38: #{tpu_custom_call.1} parent=27 // pred_check_branch
          %279 = sbr.rel (%p277) target = $region40
        $region39: #{tpu_custom_call.1} parent=27 // pred_region
          %v280 = vlaneseq
          %vm281 = vcmp.ge.s32.totalorder %v280, 0
          %vm282 = vcmp.lt.s32.totalorder %v280, 256
          %vm283 = vmand %vm281, %vm282
          %284 = vst.msk [vmem:[%s263] sm:$0x3] %vm283, -inf
          %285 = vst.msk [vmem:[%s270] sm:$0x3] %vm283, 0
        $region40: #{tpu_custom_call.1} parent=27 // pred_fallthru
          _
        %v286 = vld [vmem:[%s229] sm:$0xf]
        %v287 = vld [vmem:[%s229 + $0x4] sm:$0xf]
        %v288 = vld [vmem:[%s229 + $0x8] sm:$0xf]
        %v289 = vld [vmem:[%s229 + $0xc] sm:$0xf]
        %v290 = vld [vmem:[%s229 + $0x10] sm:$0xf]
        %v291 = vld [vmem:[%s229 + $0x14] sm:$0xf]
        %v292 = vld [vmem:[%s229 + $0x18] sm:$0xf]
        %v293 = vld [vmem:[%s229 + $0x1c] sm:$0xf]
        %v294 = vld [vmem:[%s229 + $0x20] sm:$0xf]
        %v295 = vld [vmem:[%s229 + $0x24] sm:$0xf]
        %v296 = vld [vmem:[%s229 + $0x28] sm:$0xf]
        %v297 = vld [vmem:[%s229 + $0x2c] sm:$0xf]
        %v298 = vld [vmem:[%s229 + $0x30] sm:$0xf]
        %v299 = vld [vmem:[%s229 + $0x34] sm:$0xf]
        %v300 = vld [vmem:[%s229 + $0x38] sm:$0xf]
        %v301 = vld [vmem:[%s229 + $0x3c] sm:$0xf]
        %v302 = vld [vmem:[%s229 + $0x40] sm:$0xf]
        %v303 = vld [vmem:[%s229 + $0x44] sm:$0xf]
        %v304 = vld [vmem:[%s229 + $0x48] sm:$0xf]
        %v305 = vld [vmem:[%s229 + $0x4c] sm:$0xf]
        %v306 = vld [vmem:[%s229 + $0x50] sm:$0xf]
        %v307 = vld [vmem:[%s229 + $0x54] sm:$0xf]
        %v308 = vld [vmem:[%s229 + $0x58] sm:$0xf]
        %v309 = vld [vmem:[%s229 + $0x5c] sm:$0xf]
        %v310 = vld [vmem:[%s229 + $0x60] sm:$0xf]
        %v311 = vld [vmem:[%s229 + $0x64] sm:$0xf]
        %v312 = vld [vmem:[%s229 + $0x68] sm:$0xf]
        %v313 = vld [vmem:[%s229 + $0x6c] sm:$0xf]
        %v314 = vld [vmem:[%s229 + $0x70] sm:$0xf]
        %v315 = vld [vmem:[%s229 + $0x74] sm:$0xf]
        %v316 = vld [vmem:[%s229 + $0x78] sm:$0xf]
        %v317 = vld [vmem:[%s229 + $0x7c] sm:$0xf]
        %v318 = vld [vmem:[%s238] sm:$0xff]
        %v319 = vld [vmem:[%s238 + $0x8] sm:$0xff]
        %v320 = vld [vmem:[%s238 + $0x10] sm:$0xff]
        %v321 = vld [vmem:[%s238 + $0x18] sm:$0xff]
        %v322 = vld [vmem:[%s238 + $0x20] sm:$0xff]
        %v323 = vld [vmem:[%s238 + $0x28] sm:$0xff]
        %v324 = vld [vmem:[%s238 + $0x30] sm:$0xff]
        %v325 = vld [vmem:[%s238 + $0x38] sm:$0xff]
        %v326 = vld [vmem:[%s238 + $0x40] sm:$0xff]
        %v327 = vld [vmem:[%s238 + $0x48] sm:$0xff]
        %v328 = vld [vmem:[%s238 + $0x50] sm:$0xff]
        %v329 = vld [vmem:[%s238 + $0x58] sm:$0xff]
        %v330 = vld [vmem:[%s238 + $0x60] sm:$0xff]
        %v331 = vld [vmem:[%s238 + $0x68] sm:$0xff]
        %v332 = vld [vmem:[%s238 + $0x70] sm:$0xff]
        %v333 = vld [vmem:[%s238 + $0x78] sm:$0xff]
        %v366 = vunpack.c.l.b16 %v286
        %v367 = vunpack.c.l.b16 %v287
        %v368 = vunpack.c.l.b16 %v288
        %v369 = vunpack.c.l.b16 %v289
        %v370 = vunpack.c.l.b16 %v290
        %v371 = vunpack.c.l.b16 %v291
        %v372 = vunpack.c.l.b16 %v292
        %v373 = vunpack.c.l.b16 %v293
        %v374 = vunpack.c.l.b16 %v294
        %v375 = vunpack.c.l.b16 %v295
        %v376 = vunpack.c.l.b16 %v296
        %v377 = vunpack.c.l.b16 %v297
        %v378 = vunpack.c.l.b16 %v298
        %v379 = vunpack.c.l.b16 %v299
        %v380 = vunpack.c.l.b16 %v300
        %v381 = vunpack.c.l.b16 %v301
        %v382 = vunpack.c.l.b16 %v302
        %v383 = vunpack.c.l.b16 %v303
        %v384 = vunpack.c.l.b16 %v304
        %v385 = vunpack.c.l.b16 %v305
        %v386 = vunpack.c.l.b16 %v306
        %v387 = vunpack.c.l.b16 %v307
        %v388 = vunpack.c.l.b16 %v308
        %v389 = vunpack.c.l.b16 %v309
        %v390 = vunpack.c.l.b16 %v310
        %v391 = vunpack.c.l.b16 %v311
        %v392 = vunpack.c.l.b16 %v312
        %v393 = vunpack.c.l.b16 %v313
        %v394 = vunpack.c.l.b16 %v314
        %v395 = vunpack.c.l.b16 %v315
        %v396 = vunpack.c.l.b16 %v316
        %v397 = vunpack.c.l.b16 %v317
        %v398 = vpack.c.b16 %v367, %v366
        %v399 = vpack.c.b16 %v369, %v368
        %v400 = vpack.c.b16 %v371, %v370
        %v401 = vpack.c.b16 %v373, %v372
        %v402 = vpack.c.b16 %v375, %v374
        %v403 = vpack.c.b16 %v377, %v376
        %v404 = vpack.c.b16 %v379, %v378
        %v405 = vpack.c.b16 %v381, %v380
        %v406 = vpack.c.b16 %v383, %v382
        %v407 = vpack.c.b16 %v385, %v384
        %v408 = vpack.c.b16 %v387, %v386
        %v409 = vpack.c.b16 %v389, %v388
        %v410 = vpack.c.b16 %v391, %v390
        %v411 = vpack.c.b16 %v393, %v392
        %v412 = vpack.c.b16 %v395, %v394
        %v413 = vpack.c.b16 %v397, %v396
        %v446 = vunpack.c.l.b16 %v318
        %v447 = vunpack.c.h.b16 %v318
        %v448 = vunpack.c.l.b16 %v319
        %v449 = vunpack.c.h.b16 %v319
        %v450 = vunpack.c.l.b16 %v320
        %v451 = vunpack.c.h.b16 %v320
        %v452 = vunpack.c.l.b16 %v321
        %v453 = vunpack.c.h.b16 %v321
        %v454 = vunpack.c.l.b16 %v322
        %v455 = vunpack.c.h.b16 %v322
        %v456 = vunpack.c.l.b16 %v323
        %v457 = vunpack.c.h.b16 %v323
        %v458 = vunpack.c.l.b16 %v324
        %v459 = vunpack.c.h.b16 %v324
        %v460 = vunpack.c.l.b16 %v325
        %v461 = vunpack.c.h.b16 %v325
        %v462 = vunpack.c.l.b16 %v326
        %v463 = vunpack.c.h.b16 %v326
        %v464 = vunpack.c.l.b16 %v327
        %v465 = vunpack.c.h.b16 %v327
        %v466 = vunpack.c.l.b16 %v328
        %v467 = vunpack.c.h.b16 %v328
        %v468 = vunpack.c.l.b16 %v329
        %v469 = vunpack.c.h.b16 %v329
        %v470 = vunpack.c.l.b16 %v330
        %v471 = vunpack.c.h.b16 %v330
        %v472 = vunpack.c.l.b16 %v331
        %v473 = vunpack.c.h.b16 %v331
        %v474 = vunpack.c.l.b16 %v332
        %v475 = vunpack.c.h.b16 %v332
        %v476 = vunpack.c.l.b16 %v333
        %v477 = vunpack.c.h.b16 %v333
        %v478 = vpack.c.b16 %v448, %v446
        %v479 = vpack.c.b16 %v449, %v447
        %v480 = vpack.c.b16 %v452, %v450
        %v481 = vpack.c.b16 %v453, %v451
        %v482 = vpack.c.b16 %v456, %v454
        %v483 = vpack.c.b16 %v457, %v455
        %v484 = vpack.c.b16 %v460, %v458
        %v485 = vpack.c.b16 %v461, %v459
        %v486 = vpack.c.b16 %v464, %v462
        %v487 = vpack.c.b16 %v465, %v463
        %v488 = vpack.c.b16 %v468, %v466
        %v489 = vpack.c.b16 %v469, %v467
        %v490 = vpack.c.b16 %v472, %v470
        %v491 = vpack.c.b16 %v473, %v471
        %v492 = vpack.c.b16 %v476, %v474
        %v493 = vpack.c.b16 %v477, %v475
        %510 = vmatprep.subr.bf16.mxu0 %v479
        %511 = vmatpush1.bf16.msra.mxu0 %v478
        %512 = vmatprep.subr.bf16.mxu0 %v481
        %513 = vmatpush1.bf16.msra.mxu0 %v480
        %514 = vmatprep.subr.bf16.mxu0 %v483
        %515 = vmatpush1.bf16.msra.mxu0 %v482
        %516 = vmatprep.subr.bf16.mxu0 %v485
        %517 = vmatpush1.bf16.msra.mxu0 %v484
        %518 = vmatprep.subr.bf16.mxu0 %v487
        %519 = vmatpush1.bf16.msra.mxu0 %v486
        %520 = vmatprep.subr.bf16.mxu0 %v489
        %521 = vmatpush1.bf16.msra.mxu0 %v488
        %522 = vmatprep.subr.bf16.mxu0 %v491
        %523 = vmatpush1.bf16.msra.mxu0 %v490
        %524 = vmatprep.subr.bf16.mxu0 %v493
        %525 = vmatpush1.bf16.msra.mxu0 %v492
        %526 = vmatprep.subr.bf16.mxu0 0
        %527 = vmatpush1.bf16.msra.mxu0 0
        %528 = vmatprep.subr.bf16.mxu0 0
        %529 = vmatpush1.bf16.msra.mxu0 0
        %530 = vmatprep.subr.bf16.mxu0 0
        %531 = vmatpush1.bf16.msra.mxu0 0
        %532 = vmatprep.subr.bf16.mxu0 0
        %533 = vmatpush1.bf16.msra.mxu0 0
        %534 = vmatprep.subr.bf16.mxu0 0
        %535 = vmatpush1.bf16.msra.mxu0 0
        %536 = vmatprep.subr.bf16.mxu0 0
        %537 = vmatpush1.bf16.msra.mxu0 0
        %538 = vmatprep.subr.bf16.mxu0 0
        %539 = vmatpush1.bf16.msra.mxu0 0
        %540 = vmatprep.subr.bf16.mxu0 0
        %541 = vmatpush1.bf16.msra.mxu0 0
        %542 = vmatprep.mubr.bf16.mxu0 0
        %543 = vmatmul.mubr.bf16.gmra.mrb[0].mxu0 %v398
        %v544 = vpop.f32.mrb[0].mxu0
        %v545 = vadd.f32 0.0, %v544
        %v546 = vpop.f32.mrb[0].mxu0
        %v547 = vadd.f32 0.0, %v546
        %v548 = vpop.f32.mrb[0].mxu0
        %v549 = vadd.f32 0.0, %v548
        %v550 = vpop.f32.mrb[0].mxu0
        %v551 = vadd.f32 0.0, %v550
        %552 = vmatprep.mubr.bf16.mxu0 0
        %553 = vmatmul.mubr.bf16.gmra.mrb[0].mxu0 %v399
        %v554 = vpop.f32.mrb[0].mxu0
        %v555 = vadd.f32 0.0, %v554
        %v556 = vpop.f32.mrb[0].mxu0
        %v557 = vadd.f32 0.0, %v556
        %v558 = vpop.f32.mrb[0].mxu0
        %v559 = vadd.f32 0.0, %v558
        %v560 = vpop.f32.mrb[0].mxu0
        %v561 = vadd.f32 0.0, %v560
        %562 = vmatprep.mubr.bf16.mxu0 0
        %563 = vmatmul.mubr.bf16.gmra.mrb[0].mxu0 %v400
        %v564 = vpop.f32.mrb[0].mxu0
        %v565 = vadd.f32 0.0, %v564
        %v566 = vpop.f32.mrb[0].mxu0
        %v567 = vadd.f32 0.0, %v566
        %v568 = vpop.f32.mrb[0].mxu0
        %v569 = vadd.f32 0.0, %v568
        %v570 = vpop.f32.mrb[0].mxu0
        %v571 = vadd.f32 0.0, %v570
        %572 = vmatprep.mubr.bf16.mxu0 0
        %573 = vmatmul.mubr.bf16.gmra.mrb[0].mxu0 %v401
        %v574 = vpop.f32.mrb[0].mxu0
        %v575 = vadd.f32 0.0, %v574
        %v576 = vpop.f32.mrb[0].mxu0
        %v577 = vadd.f32 0.0, %v576
        %v578 = vpop.f32.mrb[0].mxu0
        %v579 = vadd.f32 0.0, %v578
        %v580 = vpop.f32.mrb[0].mxu0
        %v581 = vadd.f32 0.0, %v580
        %582 = vmatprep.mubr.bf16.mxu0 0
        %583 = vmatmul.mubr.bf16.gmra.mrb[0].mxu0 %v402
        %v584 = vpop.f32.mrb[0].mxu0
        %v585 = vadd.f32 0.0, %v584
        %v586 = vpop.f32.mrb[0].mxu0
        %v587 = vadd.f32 0.0, %v586
        %v588 = vpop.f32.mrb[0].mxu0
        %v589 = vadd.f32 0.0, %v588
        %v590 = vpop.f32.mrb[0].mxu0
        %v591 = vadd.f32 0.0, %v590
        %592 = vmatprep.mubr.bf16.mxu0 0
        %593 = vmatmul.mubr.bf16.gmra.mrb[0].mxu0 %v403
        %v594 = vpop.f32.mrb[0].mxu0
        %v595 = vadd.f32 0.0, %v594
        %v596 = vpop.f32.mrb[0].mxu0
        %v597 = vadd.f32 0.0, %v596
        %v598 = vpop.f32.mrb[0].mxu0
        %v599 = vadd.f32 0.0, %v598
        %v600 = vpop.f32.mrb[0].mxu0
        %v601 = vadd.f32 0.0, %v600
        %602 = vmatprep.mubr.bf16.mxu0 0
        %603 = vmatmul.mubr.bf16.gmra.mrb[0].mxu0 %v404
        %v604 = vpop.f32.mrb[0].mxu0
        %v605 = vadd.f32 0.0, %v604
        %v606 = vpop.f32.mrb[0].mxu0
        %v607 = vadd.f32 0.0, %v606
        %v608 = vpop.f32.mrb[0].mxu0
        %v609 = vadd.f32 0.0, %v608
        %v610 = vpop.f32.mrb[0].mxu0
        %v611 = vadd.f32 0.0, %v610
        %612 = vmatprep.mubr.bf16.mxu0 0
        %613 = vmatmul.mubr.bf16.gmra.mrb[0].mxu0 %v405
        %v614 = vpop.f32.mrb[0].mxu0
        %v615 = vadd.f32 0.0, %v614
        %v616 = vpop.f32.mrb[0].mxu0
        %v617 = vadd.f32 0.0, %v616
        %v618 = vpop.f32.mrb[0].mxu0
        %v619 = vadd.f32 0.0, %v618
        %v620 = vpop.f32.mrb[0].mxu0
        %v621 = vadd.f32 0.0, %v620
        %622 = vmatprep.mubr.bf16.mxu0 0
        %623 = vmatmul.mubr.bf16.gmra.mrb[0].mxu0 %v406
        %v624 = vpop.f32.mrb[0].mxu0
        %v625 = vadd.f32 0.0, %v624
        %v626 = vpop.f32.mrb[0].mxu0
        %v627 = vadd.f32 0.0, %v626
        %v628 = vpop.f32.mrb[0].mxu0
        %v629 = vadd.f32 0.0, %v628
        %v630 = vpop.f32.mrb[0].mxu0
        %v631 = vadd.f32 0.0, %v630
        %632 = vmatprep.mubr.bf16.mxu0 0
        %633 = vmatmul.mubr.bf16.gmra.mrb[0].mxu0 %v407
        %v634 = vpop.f32.mrb[0].mxu0
        %v635 = vadd.f32 0.0, %v634
        %v636 = vpop.f32.mrb[0].mxu0
        %v637 = vadd.f32 0.0, %v636
        %v638 = vpop.f32.mrb[0].mxu0
        %v639 = vadd.f32 0.0, %v638
        %v640 = vpop.f32.mrb[0].mxu0
        %v641 = vadd.f32 0.0, %v640
        %642 = vmatprep.mubr.bf16.mxu0 0
        %643 = vmatmul.mubr.bf16.gmra.mrb[0].mxu0 %v408
        %v644 = vpop.f32.mrb[0].mxu0
        %v645 = vadd.f32 0.0, %v644
        %v646 = vpop.f32.mrb[0].mxu0
        %v647 = vadd.f32 0.0, %v646
        %v648 = vpop.f32.mrb[0].mxu0
        %v649 = vadd.f32 0.0, %v648
        %v650 = vpop.f32.mrb[0].mxu0
        %v651 = vadd.f32 0.0, %v650
        %652 = vmatprep.mubr.bf16.mxu0 0
        %653 = vmatmul.mubr.bf16.gmra.mrb[0].mxu0 %v409
        %v654 = vpop.f32.mrb[0].mxu0
        %v655 = vadd.f32 0.0, %v654
        %v656 = vpop.f32.mrb[0].mxu0
        %v657 = vadd.f32 0.0, %v656
        %v658 = vpop.f32.mrb[0].mxu0
        %v659 = vadd.f32 0.0, %v658
        %v660 = vpop.f32.mrb[0].mxu0
        %v661 = vadd.f32 0.0, %v660
        %662 = vmatprep.mubr.bf16.mxu0 0
        %663 = vmatmul.mubr.bf16.gmra.mrb[0].mxu0 %v410
        %v664 = vpop.f32.mrb[0].mxu0
        %v665 = vadd.f32 0.0, %v664
        %v666 = vpop.f32.mrb[0].mxu0
        %v667 = vadd.f32 0.0, %v666
        %v668 = vpop.f32.mrb[0].mxu0
        %v669 = vadd.f32 0.0, %v668
        %v670 = vpop.f32.mrb[0].mxu0
        %v671 = vadd.f32 0.0, %v670
        %672 = vmatprep.mubr.bf16.mxu0 0
        %673 = vmatmul.mubr.bf16.gmra.mrb[0].mxu0 %v411
        %v674 = vpop.f32.mrb[0].mxu0
        %v675 = vadd.f32 0.0, %v674
        %v676 = vpop.f32.mrb[0].mxu0
        %v677 = vadd.f32 0.0, %v676
        %v678 = vpop.f32.mrb[0].mxu0
        %v679 = vadd.f32 0.0, %v678
        %v680 = vpop.f32.mrb[0].mxu0
        %v681 = vadd.f32 0.0, %v680
        %682 = vmatprep.mubr.bf16.mxu0 0
        %683 = vmatmul.mubr.bf16.gmra.mrb[0].mxu0 %v412
        %v684 = vpop.f32.mrb[0].mxu0
        %v685 = vadd.f32 0.0, %v684
        %v686 = vpop.f32.mrb[0].mxu0
        %v687 = vadd.f32 0.0, %v686
        %v688 = vpop.f32.mrb[0].mxu0
        %v689 = vadd.f32 0.0, %v688
        %v690 = vpop.f32.mrb[0].mxu0
        %v691 = vadd.f32 0.0, %v690
        %692 = vmatprep.mubr.bf16.mxu0 0
        %693 = vmatmul.mubr.bf16.gmra.mrb[0].mxu0 %v413
        %v694 = vpop.f32.mrb[0].mxu0
        %v695 = vadd.f32 0.0, %v694
        %v696 = vpop.f32.mrb[0].mxu0
        %v697 = vadd.f32 0.0, %v696
        %v698 = vpop.f32.mrb[0].mxu0
        %v699 = vadd.f32 0.0, %v698
        %v700 = vpop.f32.mrb[0].mxu0
        %v701 = vadd.f32 0.0, %v700
        %702 = vdwg.mxu0
        %v703 = vmax.f32 %v545, %v555
        %v704 = vmax.f32 %v549, %v559
        %v705 = vmax.f32 %v703, %v565
        %v706 = vmax.f32 %v704, %v569
        %v707 = vmax.f32 %v705, %v575
        %v708 = vmax.f32 %v706, %v579
        %v709 = vmax.f32 %v707, %v585
        %v710 = vmax.f32 %v708, %v589
        %v711 = vmax.f32 %v709, %v595
        %v712 = vmax.f32 %v710, %v599
        %v713 = vmax.f32 %v711, %v605
        %v714 = vmax.f32 %v712, %v609
        %v715 = vmax.f32 %v713, %v615
        %v716 = vmax.f32 %v714, %v619
        %v717 = vmax.f32 %v715, %v625
        %v718 = vmax.f32 %v716, %v629
        %v719 = vmax.f32 %v717, %v635
        %v720 = vmax.f32 %v718, %v639
        %v721 = vmax.f32 %v719, %v645
        %v722 = vmax.f32 %v720, %v649
        %v723 = vmax.f32 %v721, %v655
        %v724 = vmax.f32 %v722, %v659
        %v725 = vmax.f32 %v723, %v665
        %v726 = vmax.f32 %v724, %v669
        %v727 = vmax.f32 %v725, %v675
        %v728 = vmax.f32 %v726, %v679
        %v729 = vmax.f32 %v727, %v685
        %v730 = vmax.f32 %v728, %v689
        %v731 = vmax.f32 %v729, %v695
        %v732 = vmax.f32 %v730, %v699
        %v733 = vmax.f32 %v731, %v732
        %v734 = vrot.slane %v733, 4
        %v735 = vmax.f32 %v733, %v734
        %v736 = vrot.slane %v735, 2
        %v737 = vmax.f32 %v735, %v736
        %v738 = vrot.slane %v737, 1
        %v739 = vmax.f32 %v737, %v738
        %v740 = vmax.f32 %v547, %v557
        %v741 = vmax.f32 %v551, %v561
        %v742 = vmax.f32 %v740, %v567
        %v743 = vmax.f32 %v741, %v571
        %v744 = vmax.f32 %v742, %v577
        %v745 = vmax.f32 %v743, %v581
        %v746 = vmax.f32 %v744, %v587
        %v747 = vmax.f32 %v745, %v591
        %v748 = vmax.f32 %v746, %v597
        %v749 = vmax.f32 %v747, %v601
        %v750 = vmax.f32 %v748, %v607
        %v751 = vmax.f32 %v749, %v611
        %v752 = vmax.f32 %v750, %v617
        %v753 = vmax.f32 %v751, %v621
        %v754 = vmax.f32 %v752, %v627
        %v755 = vmax.f32 %v753, %v631
        %v756 = vmax.f32 %v754, %v637
        %v757 = vmax.f32 %v755, %v641
        %v758 = vmax.f32 %v756, %v647
        %v759 = vmax.f32 %v757, %v651
        %v760 = vmax.f32 %v758, %v657
        %v761 = vmax.f32 %v759, %v661
        %v762 = vmax.f32 %v760, %v667
        %v763 = vmax.f32 %v761, %v671
        %v764 = vmax.f32 %v762, %v677
        %v765 = vmax.f32 %v763, %v681
        %v766 = vmax.f32 %v764, %v687
        %v767 = vmax.f32 %v765, %v691
        %v768 = vmax.f32 %v766, %v697
        %v769 = vmax.f32 %v767, %v701
        %v770 = vmax.f32 %v768, %v769
        %v771 = vrot.slane %v770, 4
        %v772 = vmax.f32 %v770, %v771
        %v773 = vrot.slane %v772, 2
        %v774 = vmax.f32 %v772, %v773
        %v775 = vrot.slane %v774, 1
        %v776 = vmax.f32 %v774, %v775
        %v777 = vlaneseq
        %v778 = vshrl.u32 %v777, 7
        %v779 = vadd.s32 %v778, 8
        %v780 = vadd.s32 %v778, 16
        %v781 = vadd.s32 %v778, 24
        %v782 = vadd.s32 %v778, 32
        %v783 = vadd.s32 %v778, 40
        %v784 = vadd.s32 %v778, 48
        %v785 = vadd.s32 %v778, 56
        %v786 = vadd.s32 %v778, 64
        %v787 = vadd.s32 %v778, 72
        %v788 = vadd.s32 %v778, 80
        %v789 = vadd.s32 %v778, 88
        %v790 = vadd.s32 %v778, 96
        %v791 = vadd.s32 %v778, 104
        %v792 = vadd.s32 %v778, 112
        %v793 = vadd.s32 %v778, 120
        %v794 = vadd.s32 %v778, 128
        %v795 = vadd.s32 %v778, 136
        %v796 = vadd.s32 %v778, 144
        %v797 = vadd.s32 %v778, 152
        %v798 = vadd.s32 %v778, 160
        %v799 = vadd.s32 %v778, 168
        %v800 = vadd.s32 %v778, 176
        %v801 = vadd.s32 %v778, 184
        %v802 = vadd.s32 %v778, 192
        %v803 = vadd.s32 %v778, 200
        %v804 = vadd.s32 %v778, 208
        %v805 = vadd.s32 %v778, 216
        %v806 = vadd.s32 %v778, 224
        %v807 = vadd.s32 %v778, 232
        %v808 = vadd.s32 %v778, 240
        %v809 = vadd.s32 %v778, 248
        %vm810 = vcmp.eq.f32.partialorder %v545, %v739
        %vm811 = vcmp.eq.f32.partialorder %v547, %v776
        %vm812 = vcmp.eq.f32.partialorder %v549, %v739
        %vm813 = vcmp.eq.f32.partialorder %v551, %v776
        %vm814 = vcmp.eq.f32.partialorder %v555, %v739
        %vm815 = vcmp.eq.f32.partialorder %v557, %v776
        %vm816 = vcmp.eq.f32.partialorder %v559, %v739
        %vm817 = vcmp.eq.f32.partialorder %v561, %v776
        %vm818 = vcmp.eq.f32.partialorder %v565, %v739
        %vm819 = vcmp.eq.f32.partialorder %v567, %v776
        %vm820 = vcmp.eq.f32.partialorder %v569, %v739
        %vm821 = vcmp.eq.f32.partialorder %v571, %v776
        %vm822 = vcmp.eq.f32.partialorder %v575, %v739
        %vm823 = vcmp.eq.f32.partialorder %v577, %v776
        %vm824 = vcmp.eq.f32.partialorder %v579, %v739
        %vm825 = vcmp.eq.f32.partialorder %v581, %v776
        %vm826 = vcmp.eq.f32.partialorder %v585, %v739
        %vm827 = vcmp.eq.f32.partialorder %v587, %v776
        %vm828 = vcmp.eq.f32.partialorder %v589, %v739
        %vm829 = vcmp.eq.f32.partialorder %v591, %v776
        %vm830 = vcmp.eq.f32.partialorder %v595, %v739
        %vm831 = vcmp.eq.f32.partialorder %v597, %v776
        %vm832 = vcmp.eq.f32.partialorder %v599, %v739
        %vm833 = vcmp.eq.f32.partialorder %v601, %v776
        %vm834 = vcmp.eq.f32.partialorder %v605, %v739
        %vm835 = vcmp.eq.f32.partialorder %v607, %v776
        %vm836 = vcmp.eq.f32.partialorder %v609, %v739
        %vm837 = vcmp.eq.f32.partialorder %v611, %v776
        %vm838 = vcmp.eq.f32.partialorder %v615, %v739
        %vm839 = vcmp.eq.f32.partialorder %v617, %v776
        %vm840 = vcmp.eq.f32.partialorder %v619, %v739
        %vm841 = vcmp.eq.f32.partialorder %v621, %v776
        %vm842 = vcmp.eq.f32.partialorder %v625, %v739
        %vm843 = vcmp.eq.f32.partialorder %v627, %v776
        %vm844 = vcmp.eq.f32.partialorder %v629, %v739
        %vm845 = vcmp.eq.f32.partialorder %v631, %v776
        %vm846 = vcmp.eq.f32.partialorder %v635, %v739
        %vm847 = vcmp.eq.f32.partialorder %v637, %v776
        %vm848 = vcmp.eq.f32.partialorder %v639, %v739
        %vm849 = vcmp.eq.f32.partialorder %v641, %v776
        %vm850 = vcmp.eq.f32.partialorder %v645, %v739
        %vm851 = vcmp.eq.f32.partialorder %v647, %v776
        %vm852 = vcmp.eq.f32.partialorder %v649, %v739
        %vm853 = vcmp.eq.f32.partialorder %v651, %v776
        %vm854 = vcmp.eq.f32.partialorder %v655, %v739
        %vm855 = vcmp.eq.f32.partialorder %v657, %v776
        %vm856 = vcmp.eq.f32.partialorder %v659, %v739
        %vm857 = vcmp.eq.f32.partialorder %v661, %v776
        %vm858 = vcmp.eq.f32.partialorder %v665, %v739
        %vm859 = vcmp.eq.f32.partialorder %v667, %v776
        %vm860 = vcmp.eq.f32.partialorder %v669, %v739
        %vm861 = vcmp.eq.f32.partialorder %v671, %v776
        %vm862 = vcmp.eq.f32.partialorder %v675, %v739
        %vm863 = vcmp.eq.f32.partialorder %v677, %v776
        %vm864 = vcmp.eq.f32.partialorder %v679, %v739
        %vm865 = vcmp.eq.f32.partialorder %v681, %v776
        %vm866 = vcmp.eq.f32.partialorder %v685, %v739
        %vm867 = vcmp.eq.f32.partialorder %v687, %v776
        %vm868 = vcmp.eq.f32.partialorder %v689, %v739
        %vm869 = vcmp.eq.f32.partialorder %v691, %v776
        %vm870 = vcmp.eq.f32.partialorder %v695, %v739
        %vm871 = vcmp.eq.f32.partialorder %v697, %v776
        %vm872 = vcmp.eq.f32.partialorder %v699, %v739
        %vm873 = vcmp.eq.f32.partialorder %v701, %v776
        %v874 = vsel %vm810, %v778, 256
        %v875 = vsel %vm811, %v778, 256
        %v876 = vsel %vm812, %v779, 256
        %v877 = vsel %vm813, %v779, 256
        %v878 = vsel %vm814, %v780, 256
        %v879 = vsel %vm815, %v780, 256
        %v880 = vsel %vm816, %v781, 256
        %v881 = vsel %vm817, %v781, 256
        %v882 = vsel %vm818, %v782, 256
        %v883 = vsel %vm819, %v782, 256
        %v884 = vsel %vm820, %v783, 256
        %v885 = vsel %vm821, %v783, 256
        %v886 = vsel %vm822, %v784, 256
        %v887 = vsel %vm823, %v784, 256
        %v888 = vsel %vm824, %v785, 256
        %v889 = vsel %vm825, %v785, 256
        %v890 = vsel %vm826, %v786, 256
        %v891 = vsel %vm827, %v786, 256
        %v892 = vsel %vm828, %v787, 256
        %v893 = vsel %vm829, %v787, 256
        %v894 = vsel %vm830, %v788, 256
        %v895 = vsel %vm831, %v788, 256
        %v896 = vsel %vm832, %v789, 256
        %v897 = vsel %vm833, %v789, 256
        %v898 = vsel %vm834, %v790, 256
        %v899 = vsel %vm835, %v790, 256
        %v900 = vsel %vm836, %v791, 256
        %v901 = vsel %vm837, %v791, 256
        %v902 = vsel %vm838, %v792, 256
        %v903 = vsel %vm839, %v792, 256
        %v904 = vsel %vm840, %v793, 256
        %v905 = vsel %vm841, %v793, 256
        %v906 = vsel %vm842, %v794, 256
        %v907 = vsel %vm843, %v794, 256
        %v908 = vsel %vm844, %v795, 256
        %v909 = vsel %vm845, %v795, 256
        %v910 = vsel %vm846, %v796, 256
        %v911 = vsel %vm847, %v796, 256
        %v912 = vsel %vm848, %v797, 256
        %v913 = vsel %vm849, %v797, 256
        %v914 = vsel %vm850, %v798, 256
        %v915 = vsel %vm851, %v798, 256
        %v916 = vsel %vm852, %v799, 256
        %v917 = vsel %vm853, %v799, 256
        %v918 = vsel %vm854, %v800, 256
        %v919 = vsel %vm855, %v800, 256
        %v920 = vsel %vm856, %v801, 256
        %v921 = vsel %vm857, %v801, 256
        %v922 = vsel %vm858, %v802, 256
        %v923 = vsel %vm859, %v802, 256
        %v924 = vsel %vm860, %v803, 256
        %v925 = vsel %vm861, %v803, 256
        %v926 = vsel %vm862, %v804, 256
        %v927 = vsel %vm863, %v804, 256
        %v928 = vsel %vm864, %v805, 256
        %v929 = vsel %vm865, %v805, 256
        %v930 = vsel %vm866, %v806, 256
        %v931 = vsel %vm867, %v806, 256
        %v932 = vsel %vm868, %v807, 256
        %v933 = vsel %vm869, %v807, 256
        %v934 = vsel %vm870, %v808, 256
        %v935 = vsel %vm871, %v808, 256
        %v936 = vsel %vm872, %v809, 256
        %v937 = vsel %vm873, %v809, 256
        %vm938 = vcmp.lt.s32.totalorder %v874, %v878
        %v939 = vsel %vm938, %v874, %v878
        %vm940 = vcmp.lt.s32.totalorder %v876, %v880
        %v941 = vsel %vm940, %v876, %v880
        %vm942 = vcmp.lt.s32.totalorder %v939, %v882
        %v943 = vsel %vm942, %v939, %v882
        %vm944 = vcmp.lt.s32.totalorder %v941, %v884
        %v945 = vsel %vm944, %v941, %v884
        %vm946 = vcmp.lt.s32.totalorder %v943, %v886
        %v947 = vsel %vm946, %v943, %v886
        %vm948 = vcmp.lt.s32.totalorder %v945, %v888
        %v949 = vsel %vm948, %v945, %v888
        %vm950 = vcmp.lt.s32.totalorder %v947, %v890
        %v951 = vsel %vm950, %v947, %v890
        %vm952 = vcmp.lt.s32.totalorder %v949, %v892
        %v953 = vsel %vm952, %v949, %v892
        %vm954 = vcmp.lt.s32.totalorder %v951, %v894
        %v955 = vsel %vm954, %v951, %v894
        %vm956 = vcmp.lt.s32.totalorder %v953, %v896
        %v957 = vsel %vm956, %v953, %v896
        %vm958 = vcmp.lt.s32.totalorder %v955, %v898
        %v959 = vsel %vm958, %v955, %v898
        %vm960 = vcmp.lt.s32.totalorder %v957, %v900
        %v961 = vsel %vm960, %v957, %v900
        %vm962 = vcmp.lt.s32.totalorder %v959, %v902
        %v963 = vsel %vm962, %v959, %v902
        %vm964 = vcmp.lt.s32.totalorder %v961, %v904
        %v965 = vsel %vm964, %v961, %v904
        %vm966 = vcmp.lt.s32.totalorder %v963, %v906
        %v967 = vsel %vm966, %v963, %v906
        %vm968 = vcmp.lt.s32.totalorder %v965, %v908
        %v969 = vsel %vm968, %v965, %v908
        %vm970 = vcmp.lt.s32.totalorder %v967, %v910
        %v971 = vsel %vm970, %v967, %v910
        %vm972 = vcmp.lt.s32.totalorder %v969, %v912
        %v973 = vsel %vm972, %v969, %v912
        %vm974 = vcmp.lt.s32.totalorder %v971, %v914
        %v975 = vsel %vm974, %v971, %v914
        %vm976 = vcmp.lt.s32.totalorder %v973, %v916
        %v977 = vsel %vm976, %v973, %v916
        %vm978 = vcmp.lt.s32.totalorder %v975, %v918
        %v979 = vsel %vm978, %v975, %v918
        %vm980 = vcmp.lt.s32.totalorder %v977, %v920
        %v981 = vsel %vm980, %v977, %v920
        %vm982 = vcmp.lt.s32.totalorder %v979, %v922
        %v983 = vsel %vm982, %v979, %v922
        %vm984 = vcmp.lt.s32.totalorder %v981, %v924
        %v985 = vsel %vm984, %v981, %v924
        %vm986 = vcmp.lt.s32.totalorder %v983, %v926
        %v987 = vsel %vm986, %v983, %v926
        %vm988 = vcmp.lt.s32.totalorder %v985, %v928
        %v989 = vsel %vm988, %v985, %v928
        %vm990 = vcmp.lt.s32.totalorder %v987, %v930
        %v991 = vsel %vm990, %v987, %v930
        %vm992 = vcmp.lt.s32.totalorder %v989, %v932
        %v993 = vsel %vm992, %v989, %v932
        %vm994 = vcmp.lt.s32.totalorder %v991, %v934
        %v995 = vsel %vm994, %v991, %v934
        %vm996 = vcmp.lt.s32.totalorder %v993, %v936
        %v997 = vsel %vm996, %v993, %v936
        %vm998 = vcmp.lt.s32.totalorder %v995, %v997
        %v999 = vsel %vm998, %v995, %v997
        %v1000 = vrot.slane %v999, 4
        %vm1001 = vcmp.lt.s32.totalorder %v999, %v1000
        %v1002 = vsel %vm1001, %v999, %v1000
        %v1003 = vrot.slane %v1002, 2
        %vm1004 = vcmp.lt.s32.totalorder %v1002, %v1003
        %v1005 = vsel %vm1004, %v1002, %v1003
        %v1006 = vrot.slane %v1005, 1
        %vm1007 = vcmp.lt.s32.totalorder %v1005, %v1006
        %v1008 = vsel %vm1007, %v1005, %v1006
        %vm1009 = vcmp.lt.s32.totalorder %v875, %v879
        %v1010 = vsel %vm1009, %v875, %v879
        %vm1011 = vcmp.lt.s32.totalorder %v877, %v881
        %v1012 = vsel %vm1011, %v877, %v881
        %vm1013 = vcmp.lt.s32.totalorder %v1010, %v883
        %v1014 = vsel %vm1013, %v1010, %v883
        %vm1015 = vcmp.lt.s32.totalorder %v1012, %v885
        %v1016 = vsel %vm1015, %v1012, %v885
        %vm1017 = vcmp.lt.s32.totalorder %v1014, %v887
        %v1018 = vsel %vm1017, %v1014, %v887
        %vm1019 = vcmp.lt.s32.totalorder %v1016, %v889
        %v1020 = vsel %vm1019, %v1016, %v889
        %vm1021 = vcmp.lt.s32.totalorder %v1018, %v891
        %v1022 = vsel %vm1021, %v1018, %v891
        %vm1023 = vcmp.lt.s32.totalorder %v1020, %v893
        %v1024 = vsel %vm1023, %v1020, %v893
        %vm1025 = vcmp.lt.s32.totalorder %v1022, %v895
        %v1026 = vsel %vm1025, %v1022, %v895
        %vm1027 = vcmp.lt.s32.totalorder %v1024, %v897
        %v1028 = vsel %vm1027, %v1024, %v897
        %vm1029 = vcmp.lt.s32.totalorder %v1026, %v899
        %v1030 = vsel %vm1029, %v1026, %v899
        %vm1031 = vcmp.lt.s32.totalorder %v1028, %v901
        %v1032 = vsel %vm1031, %v1028, %v901
        %vm1033 = vcmp.lt.s32.totalorder %v1030, %v903
        %v1034 = vsel %vm1033, %v1030, %v903
        %vm1035 = vcmp.lt.s32.totalorder %v1032, %v905
        %v1036 = vsel %vm1035, %v1032, %v905
        %vm1037 = vcmp.lt.s32.totalorder %v1034, %v907
        %v1038 = vsel %vm1037, %v1034, %v907
        %vm1039 = vcmp.lt.s32.totalorder %v1036, %v909
        %v1040 = vsel %vm1039, %v1036, %v909
        %vm1041 = vcmp.lt.s32.totalorder %v1038, %v911
        %v1042 = vsel %vm1041, %v1038, %v911
        %vm1043 = vcmp.lt.s32.totalorder %v1040, %v913
        %v1044 = vsel %vm1043, %v1040, %v913
        %vm1045 = vcmp.lt.s32.totalorder %v1042, %v915
        %v1046 = vsel %vm1045, %v1042, %v915
        %vm1047 = vcmp.lt.s32.totalorder %v1044, %v917
        %v1048 = vsel %vm1047, %v1044, %v917
        %vm1049 = vcmp.lt.s32.totalorder %v1046, %v919
        %v1050 = vsel %vm1049, %v1046, %v919
        %vm1051 = vcmp.lt.s32.totalorder %v1048, %v921
        %v1052 = vsel %vm1051, %v1048, %v921
        %vm1053 = vcmp.lt.s32.totalorder %v1050, %v923
        %v1054 = vsel %vm1053, %v1050, %v923
        %vm1055 = vcmp.lt.s32.totalorder %v1052, %v925
        %v1056 = vsel %vm1055, %v1052, %v925
        %vm1057 = vcmp.lt.s32.totalorder %v1054, %v927
        %v1058 = vsel %vm1057, %v1054, %v927
        %vm1059 = vcmp.lt.s32.totalorder %v1056, %v929
        %v1060 = vsel %vm1059, %v1056, %v929
        %vm1061 = vcmp.lt.s32.totalorder %v1058, %v931
        %v1062 = vsel %vm1061, %v1058, %v931
        %vm1063 = vcmp.lt.s32.totalorder %v1060, %v933
        %v1064 = vsel %vm1063, %v1060, %v933
        %vm1065 = vcmp.lt.s32.totalorder %v1062, %v935
        %v1066 = vsel %vm1065, %v1062, %v935
        %vm1067 = vcmp.lt.s32.totalorder %v1064, %v937
        %v1068 = vsel %vm1067, %v1064, %v937
        %vm1069 = vcmp.lt.s32.totalorder %v1066, %v1068
        %v1070 = vsel %vm1069, %v1066, %v1068
        %v1071 = vrot.slane %v1070, 4
        %vm1072 = vcmp.lt.s32.totalorder %v1070, %v1071
        %v1073 = vsel %vm1072, %v1070, %v1071
        %v1074 = vrot.slane %v1073, 2
        %vm1075 = vcmp.lt.s32.totalorder %v1073, %v1074
        %v1076 = vsel %vm1075, %v1073, %v1074
        %v1077 = vrot.slane %v1076, 1
        %vm1078 = vcmp.lt.s32.totalorder %v1076, %v1077
        %v1079 = vsel %vm1078, %v1076, %v1077
        %s1080 = smul.u32 %s34, 256
        %v1081 = vstv %s1080
        %v1082 = vadd.s32 %v1008, %v1081
        %v1083 = vadd.s32 %v1079, %v1081
        %v1084 = vld [vmem:[%s263] sm:$0x3]
        %v1086 = vlaneseq
        %v1087 = vshrl.u32 %v1086, 7
        %v1088 = vsub.s32 0, %v1087
        %v1089 = vrot.slane %v1084, %v1088
        %v1090 = vlaneseq
        %v1091 = vshrl.u32 %v1090, 7
        %v1092 = vsub.s32 1, %v1091
        %v1093 = vrot.slane %v1084, %v1092
        %vm1096 = vcmp.gt.f32.partialorder %v739, %v1089
        %vm1097 = vcmp.gt.f32.partialorder %v776, %v1093
        %v1098 = vld [vmem:[%s270] sm:$0x3]
        %v1099 = vlaneseq
        %v1100 = vshrl.u32 %v1099, 7
        %v1101 = vsub.s32 0, %v1100
        %v1102 = vrot.slane %v1098, %v1101
        %v1103 = vlaneseq
        %v1104 = vshrl.u32 %v1103, 7
        %v1105 = vsub.s32 1, %v1104
        %v1106 = vrot.slane %v1098, %v1105
        %v1107 = vsel %vm1096, %v1082, %v1102
        %v1108 = vsel %vm1097, %v1083, %v1106
        %v1109 = vcombine.low %v1107, %v1108
        %v1111 = vunpack.c.l.s4 1966171168
        %v1112 = vunpack.c.0.s8 %v1111
        %v1113 = vlaneseq
        %v1114 = vshrl.u32 %v1113, 7
        %v1115 = vsub.s32 %v1112, %v1114
        %v1116 = vrot.slane %v1109, %v1115
        %v1118 = vunpack.c.l.s4 1966171168
        %v1119 = vunpack.c.0.s8 %v1118
        %v1120 = vlaneseq
        %v1121 = vshrl.u32 %v1120, 7
        %v1122 = vsub.s32 %v1119, %v1121
        %v1123 = vrot.slane %v1116, %v1122
        %v1124 = vlaneseq
        %vm1125 = vcmp.ge.s32.totalorder %v1124, 0
        %vm1126 = vcmp.lt.s32.totalorder %v1124, 256
        %vm1127 = vmand %vm1125, %vm1126
        %1128 = vst.msk [vmem:[%s270] sm:$0x3] %vm1127, %v1123
        %v1129 = vld [vmem:[%s263] sm:$0x3]
        %v1131 = vlaneseq
        %v1132 = vshrl.u32 %v1131, 7
        %v1133 = vsub.s32 0, %v1132
        %v1134 = vrot.slane %v1129, %v1133
        %v1135 = vlaneseq
        %v1136 = vshrl.u32 %v1135, 7
        %v1137 = vsub.s32 1, %v1136
        %v1138 = vrot.slane %v1129, %v1137
        %v1141 = vsel %vm1096, %v739, %v1134
        %v1142 = vsel %vm1097, %v776, %v1138
        %v1145 = vcombine.low %v1141, %v1142
        %v1147 = vunpack.c.l.s4 1966171168
        %v1148 = vunpack.c.0.s8 %v1147
        %v1149 = vlaneseq
        %v1150 = vshrl.u32 %v1149, 7
        %v1151 = vsub.s32 %v1148, %v1150
        %v1152 = vrot.slane %v1145, %v1151
        %v1154 = vunpack.c.l.s4 1966171168
        %v1155 = vunpack.c.0.s8 %v1154
        %v1156 = vlaneseq
        %v1157 = vshrl.u32 %v1156, 7
        %v1158 = vsub.s32 %v1155, %v1157
        %v1159 = vrot.slane %v1152, %v1158
        %1161 = vst.msk [vmem:[%s263] sm:$0x3] %vm1127, %v1159
        %s1162 = sand.u32 %s112, 1
        %s1163 = scalar_lea.sflag [#allocation4], %s1162
        %s1164 = sand.u32 %s112, 1
        %s1165 = smul.addr %s1164, 2
        %s1166 = scalar_lea.vmem [#allocation7], %s1165
        %s1167 = sand.u32 %s140, 1
        %s1168 = scalar_lea.sflag [#allocation9], %s1167
        %s1169 = sand.u32 %s140, 1
        %s1170 = smul.addr %s1169, 2
        %s1171 = scalar_lea.vmem [#allocation8], %s1170
        // Predicated region
        $region41: #{tpu_custom_call.1} parent=27 // pred_check
          %p1172 = pneg %p122
        $region42: #{tpu_custom_call.1} parent=27 // pred_check_branch
          %1174 = sbr.rel (%p1172) target = $region44
        $region43: #{tpu_custom_call.1} parent=27 // pred_region
          %s1175 = smul.u32 2, %s33
          %s1177 = ssub.s32 32, 32
          %1178 = vsyncadd %s1163, %s1177
          %s1179 = smul.addr %s32, 2
          %s1180 = sadd.s32 %s1175, %s1179
          %s1181 = smul.addr %s1180, 16
          %s1182 = scalar_lea.hbm %s2, %s1181
          %s1184 = sshll.u32 %s1166, 4
          %s1185 = int_to_ptr.vmem [resolvable:$true] %s1184
          %1187 = dma.vmem_to_hbm [thread:$0]  %s1185, 32, %s1182, %s1163
        $region44: #{tpu_custom_call.1} parent=27 // pred_fallthru
          _
        // Predicated region
        $region45: #{tpu_custom_call.1} parent=27 // pred_check
          %p1188 = pneg %p150
        $region46: #{tpu_custom_call.1} parent=27 // pred_check_branch
          %1190 = sbr.rel (%p1188) target = $region48
        $region47: #{tpu_custom_call.1} parent=27 // pred_region
          %s1191 = smul.u32 2, %s33
          %s1193 = ssub.s32 32, 32
          %1194 = vsyncadd %s1168, %s1193
          %s1195 = smul.addr %s32, 2
          %s1196 = sadd.s32 %s1191, %s1195
          %s1197 = smul.addr %s1196, 16
          %s1198 = scalar_lea.hbm %s3, %s1197
          %s1200 = sshll.u32 %s1171, 4
          %s1201 = int_to_ptr.vmem [resolvable:$true] %s1200
          %1203 = dma.vmem_to_hbm [thread:$0]  %s1201, 32, %s1198, %s1168
        $region48: #{tpu_custom_call.1} parent=27 // pred_fallthru
          _
      $region28: #{tpu_custom_call.1} parent=5 // pred_fallthru
        _
      %p1204 = scmp.le.s32.totalorder 2, %s22
      // Predicated region
      $region49: #{tpu_custom_call.1} parent=5 // pred_check
        %p1205 = pneg %p1204
      $region50: #{tpu_custom_call.1} parent=5 // pred_check_branch
        %1207 = sbr.rel (%p1205) target = $region52
      $region51: #{tpu_custom_call.1} parent=5 // pred_region
        %s1208 = ssub.s32 %s22, 2
        // Predicated region
        $region53: #{tpu_custom_call.1} parent=51 // pred_check
          %p1209 = pneg %p128
        $region54: #{tpu_custom_call.1} parent=51 // pred_check_branch
          %1211 = sbr.rel (%p1209) target = $region56
        $region55: #{tpu_custom_call.1} parent=51 // pred_region
          %s1212 = sand.u32 %s113, 1
          %s1213 = scalar_lea.sflag [#allocation4], %s1212
          %s1214 = sand.u32 %s113, 1
          %s1215 = smul.addr %s1214, 2
          %s1216 = scalar_lea.vmem [#allocation7], %s1215
          %1217 = dma.done %s1213, 32
        $region56: #{tpu_custom_call.1} parent=51 // pred_fallthru
          _
        // Predicated region
        $region57: #{tpu_custom_call.1} parent=51 // pred_check
          %p1218 = pneg %p156
        $region58: #{tpu_custom_call.1} parent=51 // pred_check_branch
          %1220 = sbr.rel (%p1218) target = $region60
        $region59: #{tpu_custom_call.1} parent=51 // pred_region
          %s1221 = sand.u32 %s141, 1
          %s1222 = scalar_lea.sflag [#allocation9], %s1221
          %s1223 = sand.u32 %s141, 1
          %s1224 = smul.addr %s1223, 2
          %s1225 = scalar_lea.vmem [#allocation8], %s1224
          %1226 = dma.done %s1222, 32
        $region60: #{tpu_custom_call.1} parent=51 // pred_fallthru
          _
      $region52: #{tpu_custom_call.1} parent=5 // pred_fallthru
        _
    $region6: #{tpu_custom_call.1} parent=1 // loop_footer
      %s26 = sadd.s32 1, %s22
    $region7: #{tpu_custom_call.1} parent=1 // loop_footer_branch
      %21 = sbr.rel target = $region3
    $region8: #{tpu_custom_call.1} parent=1 // loop_exit
      _
    %1227 = vsyncpa [#allocation3], 1
    %s1228 = scalar_lea.sflag [#allocation3], 1
    %1229 = vsyncpa %s1228, 1
    %1230 = vsyncpa [#allocation6], 1
    %s1231 = scalar_lea.sflag [#allocation6], 1
    %1232 = vsyncpa %s1231, 1
    %1233 = vsyncpa [#allocation4], 1
    %s1234 = scalar_lea.sflag [#allocation4], 1
    %1235 = vsyncpa %s1234, 1
    %1236 = vsyncpa [#allocation9], 1
    %s1237 = scalar_lea.sflag [#allocation9], 1
    %1238 = vsyncpa %s1237, 1

</llo_original>
